<compile_context>
chip_gen: v6e
topology: v6e:2x2x1
jax: 0.10.0
libtpu: 0.0.40
codegen_flags: <defaults>
</compile_context>

<pallas_src>
import math

import jax
import jax.numpy as jnp
from jax import lax
from jax.experimental import pallas as pl
from jax.experimental.pallas import tpu as pltpu


def _round_up(n, m):
    return ((n + m - 1) // m) * m


def _l2_normalize(v):
    """F.normalize(v, dim=-1, eps=1e-12) == v * rsqrt(max(||v||^2, 1e-24))."""
    v = v.astype(jnp.float32)
    return v * lax.rsqrt(
        jnp.maximum(jnp.sum(v * v, axis=-1, keepdims=True), 1e-24))


def _make_kernel(s_cos_m, s_sin_m, th, s_mm, scale, easy_margin):
    """Kernel closure over the static (scale-folded) ArcFace constants."""

    def kernel(x_ref, w_ref, label_ref, o_ref):
        ci = pl.program_id(0)                 # class-tile index (outer axis)
        tm, tn = o_ref.shape

        # cosine = x_n @ w_n^T : last-dim/last-dim contraction (no transpose),
        # MXU with f32 accumulation.  x_ref / w_ref are already L2-normalized.
        cosine = lax.dot_general(
            x_ref[...], w_ref[...],
            dimension_numbers=(((1,), (1,)), ((), ())),
            preferred_element_type=jnp.float32)          # (tm, tn)

        # Clamp guards 1 - cos^2 against fp rounding below 0 (torch would NaN
        # there; intentional, benign deviation).
        sine = jnp.sqrt(jnp.maximum(1.0 - cosine * cosine, 0.0))

        # Scale folded into the constants: one cosine*scale product instead of
        # a final full-tile multiply after the blend.
        cos_s = cosine * scale
        phi_s = cosine * s_cos_m - sine * s_sin_m
        if easy_margin:
            phi_s = jnp.where(cosine > 0.0, phi_s, cos_s)
        else:
            phi_s = jnp.where(cosine > th, phi_s, cos_s - s_mm)

        # scatter_(1, label, 1) equivalent: compare the *local* class iota with
        # the tile-offset label column ((tm,1) subtract, not a (tm,tn) add).
        local_ids = lax.broadcasted_iota(jnp.int32, (tm, tn), 1)
        lbl_local = label_ref[...] - ci * tn             # (tm, 1)
        o_ref[...] = jnp.where(local_ids == lbl_local, phi_s,
                               cos_s).astype(o_ref.dtype)

    return kernel


def arc_margin_product(x, weight, label, *, scale=64.0, margin=0.5,
                       easy_margin=False, block_m=256, block_n=1024,
                       matmul_dtype=jnp.bfloat16, out_dtype=jnp.float32,
                       inputs_normalized=False,
                       vmem_budget_bytes=24 * 1024 * 1024):
    """JAX wrapper: x (B, D), weight (C, D), label (B,) int -> (B, C) logits."""
    B, D = x.shape
    C, D2 = weight.shape
    assert D == D2, "feature dims must match"

    mm_bytes = jnp.dtype(matmul_dtype).itemsize
    out_bytes = jnp.dtype(out_dtype).itemsize

    # --- normalize + cast once, outside the grid (amortize/fuse upstream when
    #     possible; pass inputs_normalized=True to skip). ---
    if inputs_normalized:
        x_n = x.astype(matmul_dtype)
        w_n = weight.astype(matmul_dtype)
    else:
        x_n = _l2_normalize(x).astype(matmul_dtype)
        w_n = _l2_normalize(weight).astype(matmul_dtype)

    # --- tile selection: multiples of (8, 128), shrink to fit the problem and
    #     the VMEM budget (double-buffered x / W / label / out tiles). ---
    tm = min(max(8, _round_up(block_m, 8)), _round_up(B, 8))
    tn = min(max(128, _round_up(block_n, 128)), _round_up(C, 128))

    def vmem_est(tm_, tn_):
        return 2 * (tm_ * D * mm_bytes + tn_ * D * mm_bytes
                    + tm_ * 4 + tm_ * tn_ * out_bytes)

    while vmem_est(tm, tn) > vmem_budget_bytes and tn > 128:
        tn = max(128, _round_up(tn // 2, 128))
    while vmem_est(tm, tn) > vmem_budget_bytes and tm > 8:
        tm = max(8, _round_up(tm // 2, 8))

    B_pad = _round_up(B, tm)
    C_pad = _round_up(C, tn)

    # v7x megacore: if everything fits in one tile but the class axis splits
    # evenly into two lane-aligned tiles, split it so both TensorCores get work
    # (no extra padding; on 1-TC chips it only adds one ~0.35 us grid step).
    if (C_pad // tn) * (B_pad // tm) < 2 and C_pad >= 256 and C_pad % 256 == 0:
        tn = C_pad // 2

    n_ci = C_pad // tn
    n_bi = B_pad // tm

    if B_pad != B:
        x_n = jnp.pad(x_n, ((0, B_pad - B), (0, 0)))
    if C_pad != C:
        w_n = jnp.pad(w_n, ((0, C_pad - C), (0, 0)))
    label2d = label.astype(jnp.int32).reshape(B, 1)
    if B_pad != B:
        label2d = jnp.pad(label2d, ((0, B_pad - B), (0, 0)),
                          constant_values=-1)            # never matches a class

    cos_m = math.cos(margin)
    sin_m = math.sin(margin)
    th = math.cos(math.pi - margin)
    mm = math.sin(math.pi - margin) * margin

    kernel = _make_kernel(scale * cos_m, scale * sin_m, th, scale * mm,
                          scale, easy_margin)

    out = pl.pallas_call(
        kernel,
        out_shape=jax.ShapeDtypeStruct((B_pad, C_pad), out_dtype),
        grid_spec=pltpu.PrefetchScalarGridSpec(
            num_scalar_prefetch=0,
            grid=(n_ci, n_bi),                 # class tiles outer, batch inner
            in_specs=[
                pl.BlockSpec((tm, D), lambda ci, bi: (bi, 0)),   # normalized x
                pl.BlockSpec((tn, D), lambda ci, bi: (ci, 0)),   # normalized W
                pl.BlockSpec((tm, 1), lambda ci, bi: (bi, 0)),   # label column
            ],
            out_specs=pl.BlockSpec((tm, tn), lambda ci, bi: (bi, ci)),
        ),
        compiler_params=pltpu.CompilerParams(
            dimension_semantics=("parallel", "parallel")),
    )(x_n, w_n, label2d)

    if B_pad != B or C_pad != C:
        out = out[:B, :C]
    return out


def _reference(x, weight, label, *, scale=64.0, margin=0.5, easy_margin=False):
    """Pure-JAX reference mirroring the PyTorch forward."""
    cos_m = math.cos(margin)
    sin_m = math.sin(margin)
    th = math.cos(math.pi - margin)
    mm = math.sin(math.pi - margin) * margin

    x_n = x / jnp.maximum(jnp.linalg.norm(x, axis=1, keepdims=True), 1e-12)
    w_n = weight / jnp.maximum(jnp.linalg.norm(weight, axis=1, keepdims=True),
                               1e-12)
    cosine = x_n @ w_n.T
    sine = jnp.sqrt(jnp.maximum(1.0 - cosine ** 2, 0.0))
    phi = cosine * cos_m - sine * sin_m
    if easy_margin:
        phi = jnp.where(cosine > 0, phi, cosine)
    else:
        phi = jnp.where(cosine > th, phi, cosine - mm)
    one_hot = jax.nn.one_hot(label, cosine.shape[1], dtype=cosine.dtype)
    return (one_hot * phi + (1.0 - one_hot) * cosine) * scale


if __name__ == "__main__":
    key = jax.random.PRNGKey(0)
    k1, k2, k3, k4, k5, k6 = jax.random.split(key, 6)

    # ---- Test A: small module-sized shapes, f32 MXU path, tight check ----
    B, D, C = 8, 32, 16
    bound = math.sqrt(6.0 / (D + C))                 # xavier_uniform_
    x = jax.random.normal(k1, (B, D), dtype=jnp.float32)
    w = jax.random.uniform(k2, (C, D), dtype=jnp.float32,
                           minval=-bound, maxval=bound)
    lbl = jax.random.randint(k3, (B,), 0, C, dtype=jnp.int32)

    out = arc_margin_product(x, w, lbl, matmul_dtype=jnp.float32)
    out = jax.block_until_ready(out)
    ref = _reference(x, w, lbl)
    assert out.shape == (B, C)
    assert jnp.allclose(out, ref, atol=1e-3, rtol=1e-4), "f32 path mismatch (A)"

    # ---- Test B: multi-tile grid (padding + local-label offset) ----------
    B2, D2, C2 = 24, 64, 300
    bound2 = math.sqrt(6.0 / (D2 + C2))
    x2 = jax.random.normal(k4, (B2, D2), dtype=jnp.float32)
    w2 = jax.random.uniform(k5, (C2, D2), dtype=jnp.float32,
                            minval=-bound2, maxval=bound2)
    lbl2 = jax.random.randint(k6, (B2,), 0, C2, dtype=jnp.int32)

    # B1: f32 matmul, easy_margin branch, small tiles -> grid (3, 3)
    out_b1 = arc_margin_product(x2, w2, lbl2, easy_margin=True,
                                block_m=8, block_n=128,
                                matmul_dtype=jnp.float32)
    out_b1 = jax.block_until_ready(out_b1)
    ref_b1 = _reference(x2, w2, lbl2, easy_margin=True)
    assert out_b1.shape == (B2, C2)
    assert jnp.allclose(out_b1, ref_b1, atol=1e-3, rtol=1e-4), \
        "f32 path mismatch (B1)"

    # B2: default bf16 MXU path (f32 accumulation), resident-x single batch
    # tile -> loose tolerance (bf16 unit vectors)
    out_b2 = arc_margin_product(x2, w2, lbl2, easy_margin=False,
                                matmul_dtype=jnp.bfloat16)
    out_b2 = jax.block_until_ready(out_b2)
    ref_b2 = _reference(x2, w2, lbl2, easy_margin=False)
    assert out_b2.shape == (B2, C2)
    assert bool(jnp.all(jnp.isfinite(out_b2)))
    assert float(jnp.max(jnp.abs(out_b2 - ref_b2))) < 1.0, \
        "bf16 path mismatch (B2)"

    # ---- Test C: bf16 logits (halved output HBM stream) ------------------
    out_c = arc_margin_product(x2, w2, lbl2, out_dtype=jnp.bfloat16)
    out_c = jax.block_until_ready(out_c)
    assert out_c.dtype == jnp.bfloat16 and out_c.shape == (B2, C2)
    out_c32 = out_c.astype(jnp.float32)
    assert bool(jnp.all(jnp.isfinite(out_c32)))
    assert float(jnp.max(jnp.abs(out_c32 - ref_b2))) < 2.0, \
        "bf16 output mismatch (C)"

    print("KERNEL_OK")
</pallas_src>

<mosaic_0001>
module attributes {stable_mosaic.version = 11 : i64} {
  func.func @kernel(%arg0: i32, %arg1: i32, %arg2: memref<8x32xf32, #tpu.memory_space<vmem>>, %arg3: memref<128x32xf32, #tpu.memory_space<vmem>>, %arg4: memref<8x1xi32, #tpu.memory_space<vmem>>, %arg5: memref<8x128xf32, #tpu.memory_space<vmem>>) attributes {dimension_semantics = [#tpu.dimension_semantics<parallel>, #tpu.dimension_semantics<parallel>], iteration_bounds = array<i64: 1, 1>, scalar_prefetch = 0 : i64, scratch_operands = 0 : i64, tpu.core_type = #tpu.core_type<tc>, window_params = [{transform_indices = @transform_0, window_bounds = array<i64: 8, 32>}, {transform_indices = @transform_1, window_bounds = array<i64: 128, 32>}, {transform_indices = @transform_2, window_bounds = array<i64: 8, 1>}, {transform_indices = @transform_3, window_bounds = array<i64: 8, 128>}]} {
    %c0 = arith.constant 0 : index
    %c0_0 = arith.constant 0 : index
    %0 = vector.load %arg2[%c0, %c0_0] : memref<8x32xf32, #tpu.memory_space<vmem>>, vector<8x32xf32>
    %c0_1 = arith.constant 0 : index
    %c0_2 = arith.constant 0 : index
    %1 = vector.load %arg3[%c0_1, %c0_2] : memref<128x32xf32, #tpu.memory_space<vmem>>, vector<128x32xf32>
    %cst = arith.constant dense<0.000000e+00> : vector<8x128xf32>
    %2 = tpu.matmul %0, %1, %cst {dimension_numbers = #tpu.dot_dimension_numbers<[1], [1], [0], [0], [0, 0, 1, 0], [], []>} : vector<8x32xf32>, vector<128x32xf32>, vector<8x128xf32> -> vector<8x128xf32>
    %3 = arith.mulf %2, %2 : vector<8x128xf32>
    %cst_3 = arith.constant 1.000000e+00 : f32
    %4 = vector.broadcast %cst_3 : f32 to vector<8x128xf32>
    %5 = arith.subf %4, %3 : vector<8x128xf32>
    %cst_4 = arith.constant 0.000000e+00 : f32
    %6 = vector.broadcast %cst_4 : f32 to vector<8x128xf32>
    %7 = arith.maximumf %5, %6 : vector<8x128xf32>
    %8 = math.sqrt %7 : vector<8x128xf32>
    %cst_5 = arith.constant 6.400000e+01 : f32
    %9 = vector.broadcast %cst_5 : f32 to vector<8x128xf32>
    %10 = arith.mulf %2, %9 : vector<8x128xf32>
    %cst_6 = arith.constant 56.1652832 : f32
    %11 = vector.broadcast %cst_6 : f32 to vector<8x128xf32>
    %12 = arith.mulf %2, %11 : vector<8x128xf32>
    %cst_7 = arith.constant 30.6832352 : f32
    %13 = vector.broadcast %cst_7 : f32 to vector<8x128xf32>
    %14 = arith.mulf %8, %13 : vector<8x128xf32>
    %15 = arith.subf %12, %14 : vector<8x128xf32>
    %cst_8 = arith.constant -0.87758255 : f32
    %16 = vector.broadcast %cst_8 : f32 to vector<8x128xf32>
    %17 = arith.cmpf ogt, %2, %16 : vector<8x128xf32>
    %cst_9 = arith.constant 15.3416176 : f32
    %18 = vector.broadcast %cst_9 : f32 to vector<8x128xf32>
    %19 = arith.subf %10, %18 : vector<8x128xf32>
    %20 = arith.select %17, %15, %19 : vector<8x128xi1>, vector<8x128xf32>
    %21 = tpu.iota {dimensions = array<i32: 1>} : vector<8x128xi32>
    %c0_10 = arith.constant 0 : index
    %c0_11 = arith.constant 0 : index
    %22 = vector.load %arg4[%c0_10, %c0_11] : memref<8x1xi32, #tpu.memory_space<vmem>>, vector<8x1xi32>
    %c128_i32 = arith.constant 128 : i32
    %23 = arith.muli %arg0, %c128_i32 : i32
    %24 = vector.broadcast %23 : i32 to vector<8x1xi32>
    %25 = arith.subi %22, %24 : vector<8x1xi32>
    %26 = vector.broadcast %25 : vector<8x1xi32> to vector<8x128xi32>
    %27 = arith.cmpi eq, %21, %26 : vector<8x128xi32>
    %28 = arith.select %27, %20, %10 : vector<8x128xi1>, vector<8x128xf32>
    %c0_12 = arith.constant 0 : index
    %c0_13 = arith.constant 0 : index
    %29 = vector.load %arg5[%c0_12, %c0_13] : memref<8x128xf32, #tpu.memory_space<vmem>>, vector<8x128xf32>
    tpu.vector_store %arg5[%c0_12, %c0_13], %28 {strides = array<i32>} : memref<8x128xf32, #tpu.memory_space<vmem>>, vector<8x128xf32>,
    return
  }
  func.func @transform_0(%arg0: i32, %arg1: i32) -> (i32, i32) {
    %c0_i32 = arith.constant 0 : i32
    %c0_i32_0 = arith.constant 0 : i32
    return %arg1, %c0_i32 : i32, i32
  }
  func.func @transform_1(%arg0: i32, %arg1: i32) -> (i32, i32) {
    %c0_i32 = arith.constant 0 : i32
    %c0_i32_0 = arith.constant 0 : i32
    return %arg0, %c0_i32 : i32, i32
  }
  func.func @transform_2(%arg0: i32, %arg1: i32) -> (i32, i32) {
    %c0_i32 = arith.constant 0 : i32
    %c0_i32_0 = arith.constant 0 : i32
    return %arg1, %c0_i32 : i32, i32
  }
  func.func @transform_3(%arg0: i32, %arg1: i32) -> (i32, i32) {
    %c0_i32 = arith.constant 0 : i32
    return %arg1, %arg0 : i32, i32
  }
}

</mosaic_0001>

<llo_original>
// kernel: tpu_custom_call.1
$region0: #{tpu_custom_call.1}
  #allocation0 [shape = 'u32[]', space=smem, size = 0x4, offset = 0x4, fixed_abs, tag = 'smem constant byte address 0x4 - core index']
  #allocation1 [shape = 'u32[144,128]{1,0:T(1,128)}', space=vmem, size = 0x12000, scoped, tag = 'internal scratch']
  %s0 = inlined_call_operand.vmem [shape: f32[8,32], index: 0, kind: input, shape index: {}]
  %s1 = inlined_call_operand.vmem [shape: f32[128,32], index: 1, kind: input, shape index: {}]
  %s2 = inlined_call_operand.vmem [shape: s32[8,1], index: 2, kind: input, shape index: {}]
  %s3 = inlined_call_operand.hbm [shape: f32[8,128], index: 3, kind: output, shape index: {}]
  %s4 = sld [smem:[#allocation0]]
  $region22: #{tpu_custom_call.1} parent=0
    _
  %s6 = ssub.s32 1, %s4
  %s7 = scalar_select 0, %s6, %s4
  $region1: #{tpu_custom_call.1} parent=0
    #allocation2 [shape = 'u8[4096]{0}', space=vmem, size = 0x1000, scoped, tag = 'output window, operand 0, single buffered']
    #allocation3 [shape = 's32[1]{0}', space=sflag, size = 0x4, scoped, tag = 'scoped memory for tpu_custom_call.1']
    %8 = vsyncpa [#allocation3], 0
    // Predicated region
    $region2: #{tpu_custom_call.1} parent=1 // pred_check
      _
    $region3: #{tpu_custom_call.1} parent=1 // pred_check_branch
      %10 = sbr.rel (0) target = $region5
    $region4: #{tpu_custom_call.1} parent=1 // pred_region
      _
    $region5: #{tpu_custom_call.1} parent=1 // pred_fallthru
      _
    // Predicated region
    $region6: #{tpu_custom_call.1} parent=1 // pred_check
      _
    $region7: #{tpu_custom_call.1} parent=1 // pred_check_branch
      %12 = sbr.rel (0) target = $region9
    $region8: #{tpu_custom_call.1} parent=1 // pred_region
      _
    $region9: #{tpu_custom_call.1} parent=1 // pred_fallthru
      _
    // Predicated region
    $region10: #{tpu_custom_call.1} parent=1 // pred_check
      _
    $region11: #{tpu_custom_call.1} parent=1 // pred_check_branch
      %14 = sbr.rel (0) target = $region13
    $region12: #{tpu_custom_call.1} parent=1 // pred_region
      _
    $region13: #{tpu_custom_call.1} parent=1 // pred_fallthru
      _
    %v15 = vld [vmem:[%s0] sm:$0xff]
    %v16 = vld [vmem:[%s1] sm:$0xff]
    %v17 = vld [vmem:[%s1 + $0x8] sm:$0xff]
    %v18 = vld [vmem:[%s1 + $0x10] sm:$0xff]
    %v19 = vld [vmem:[%s1 + $0x18] sm:$0xff]
    %v20 = vld [vmem:[%s1 + $0x20] sm:$0xff]
    %v21 = vld [vmem:[%s1 + $0x28] sm:$0xff]
    %v22 = vld [vmem:[%s1 + $0x30] sm:$0xff]
    %v23 = vld [vmem:[%s1 + $0x38] sm:$0xff]
    %v24 = vld [vmem:[%s1 + $0x40] sm:$0xff]
    %v25 = vld [vmem:[%s1 + $0x48] sm:$0xff]
    %v26 = vld [vmem:[%s1 + $0x50] sm:$0xff]
    %v27 = vld [vmem:[%s1 + $0x58] sm:$0xff]
    %v28 = vld [vmem:[%s1 + $0x60] sm:$0xff]
    %v29 = vld [vmem:[%s1 + $0x68] sm:$0xff]
    %v30 = vld [vmem:[%s1 + $0x70] sm:$0xff]
    %v31 = vld [vmem:[%s1 + $0x78] sm:$0xff]
    %vm32 = vcmask 261120
    %v34 = vsel %vm32, %v15, 0
    %v37 = vsel %vm32, %v16, 0
    %v40 = vsel %vm32, %v17, 0
    %v43 = vsel %vm32, %v18, 0
    %v46 = vsel %vm32, %v19, 0
    %v49 = vsel %vm32, %v20, 0
    %v52 = vsel %vm32, %v21, 0
    %v55 = vsel %vm32, %v22, 0
    %v58 = vsel %vm32, %v23, 0
    %v61 = vsel %vm32, %v24, 0
    %v64 = vsel %vm32, %v25, 0
    %v67 = vsel %vm32, %v26, 0
    %v70 = vsel %vm32, %v27, 0
    %v73 = vsel %vm32, %v28, 0
    %v76 = vsel %vm32, %v29, 0
    %v79 = vsel %vm32, %v30, 0
    %v82 = vsel %vm32, %v31, 0
    %84 = vmatprep.subr.mxu0 0.0
    %85 = vmatpush1.xpose.msra.mxu0 %v82
    %86 = vmatprep.subr.mxu0 0.0
    %87 = vmatpush1.xpose.msra.mxu0 %v79
    %88 = vmatprep.subr.mxu0 0.0
    %89 = vmatpush1.xpose.msra.mxu0 %v76
    %90 = vmatprep.subr.mxu0 0.0
    %91 = vmatpush1.xpose.msra.mxu0 %v73
    %92 = vmatprep.subr.mxu0 0.0
    %93 = vmatpush1.xpose.msra.mxu0 %v70
    %94 = vmatprep.subr.mxu0 0.0
    %95 = vmatpush1.xpose.msra.mxu0 %v67
    %96 = vmatprep.subr.mxu0 0.0
    %97 = vmatpush1.xpose.msra.mxu0 %v64
    %98 = vmatprep.subr.mxu0 0.0
    %99 = vmatpush1.xpose.msra.mxu0 %v61
    %100 = vmatprep.subr.mxu0 0.0
    %101 = vmatpush1.xpose.msra.mxu0 %v58
    %102 = vmatprep.subr.mxu0 0.0
    %103 = vmatpush1.xpose.msra.mxu0 %v55
    %104 = vmatprep.subr.mxu0 0.0
    %105 = vmatpush1.xpose.msra.mxu0 %v52
    %106 = vmatprep.subr.mxu0 0.0
    %107 = vmatpush1.xpose.msra.mxu0 %v49
    %108 = vmatprep.subr.mxu0 0.0
    %109 = vmatpush1.xpose.msra.mxu0 %v46
    %110 = vmatprep.subr.mxu0 0.0
    %111 = vmatpush1.xpose.msra.mxu0 %v43
    %112 = vmatprep.subr.mxu0 0.0
    %113 = vmatpush1.xpose.msra.mxu0 %v40
    %114 = vmatprep.subr.mxu0 0.0
    %115 = vmatpush1.xpose.msra.mxu0 %v37
    %116 = vmatprep.subr.mxu0 0.0
    %117 = vmatpush2.xpose.msra.mxu0 0.0
    %118 = vmatprep.subr.mxu0 0.0
    %119 = vmatpush2.xpose.msra.mxu0 0.0
    %120 = vmatprep.subr.mxu0 0.0
    %121 = vmatpush2.xpose.msra.mxu0 0.0
    %122 = vmatprep.subr.mxu0 0.0
    %123 = vmatpush2.xpose.msra.mxu0 0.0
    %124 = vmatprep.subr.mxu0 0.0
    %125 = vmatpush2.xpose.msra.mxu0 0.0
    %126 = vmatprep.subr.mxu0 0.0
    %127 = vmatpush2.xpose.msra.mxu0 0.0
    %128 = vmatprep.subr.mxu0 0.0
    %129 = vmatpush2.xpose.msra.mxu0 0.0
    %130 = vmatprep.subr.mxu0 0.0
    %131 = vmatpush2.xpose.msra.mxu0 0.0
    %132 = vmatprep.subr.mxu0 0.0
    %133 = vmatpush2.xpose.msra.mxu0 0.0
    %134 = vmatprep.subr.mxu0 0.0
    %135 = vmatpush2.xpose.msra.mxu0 0.0
    %136 = vmatprep.subr.mxu0 0.0
    %137 = vmatpush2.xpose.msra.mxu0 0.0
    %138 = vmatprep.subr.mxu0 0.0
    %139 = vmatpush2.xpose.msra.mxu0 0.0
    %140 = vmatprep.subr.mxu0 0.0
    %141 = vmatpush2.xpose.msra.mxu0 0.0
    %142 = vmatprep.subr.mxu0 0.0
    %143 = vmatpush2.xpose.msra.mxu0 0.0
    %144 = vmatprep.subr.mxu0 0.0
    %145 = vmatpush2.xpose.msra.mxu0 0.0
    %146 = vmatprep.subr.mxu0 0.0
    %147 = vmatpush2.xpose.msra.mxu0 0.0
    %148 = vmatprep.mubr.f32.mxu0 0.0
    %149 = vmatmul.mubr.f32.gmra.mxu0 %v34
    %v150 = vpop.f32.mrf.mxu0
    %v151 = vadd.f32 0.0, %v150
    %v152 = vpop.f32.mrf.mxu0
    %153 = vdwg.mxu0
    %v154 = vmul.f32 %v151, %v151
    %v155 = vsub.f32 1.0, %v154
    %v156 = vmax.f32 %v155, 0.0
    %v157 = vrsqrt.pop %v156
    %v158 = vmul.f32 %v156, %v157
    %vm159 = vcmp.eq.f32.partialorder %v156, inf
    %v160 = vsel %vm159, %v156, %v158
    %vm161 = vcmp.eq.f32.partialorder %v156, 0.0
    %v162 = vand.u32 %v156, 2147483648
    %v163 = vsel %vm161, %v162, %v160
    %v164 = vmul.f32 %v151, 64.0
    %v165 = vmul.f32 %v151, 56.165283
    %v166 = vmul.f32 %v163, 30.683235
    %v167 = vsub.f32 %v165, %v166
    %vm168 = vcmp.gt.f32.partialorder %v151, -0.87758255
    %v169 = vsub.f32 %v164, 15.341618
    %v170 = vsel %vm168, %v167, %v169
    %v171 = vlaneseq
    %v172 = vand.u32 %v171, 127
    %v173 = vld [vmem:[%s2] sm:$0xff]
    %s174 = smul.u32 0, 128
    %v175 = vstv %s174
    %v176 = vsub.s32 %v173, %v175
    %177 = vset.pattern.permute.xlu0 0
    %178 = vperm.xlu0 %177, %v176
    %v179 = vpop.permute.xlu0 %178
    %vm180 = vcmp.eq.s32.totalorder %v172, %v179
    %v181 = vsel %vm180, %v170, %v164
    %182 = vst [vmem:[#allocation2] sm:$0xff] %v181
    // Predicated region
    $region14: #{tpu_custom_call.1} parent=1 // pred_check
      _
    $region15: #{tpu_custom_call.1} parent=1 // pred_check_branch
      %184 = sbr.rel (0) target = $region17
    $region16: #{tpu_custom_call.1} parent=1 // pred_region
      %s186 = ssub.s32 128, 128
      %187 = vsyncadd [#allocation3], %s186
      %s189 = sshll.u32 [#allocation2], 4
      %s190 = int_to_ptr.vmem [resolvable:$true] %s189
      %192 = dma.vmem_to_hbm [thread:$0]  %s190, 128, %s3, [#allocation3]
    $region17: #{tpu_custom_call.1} parent=1 // pred_fallthru
      _
    // Predicated region
    $region18: #{tpu_custom_call.1} parent=1 // pred_check
      _
    $region19: #{tpu_custom_call.1} parent=1 // pred_check_branch
      %194 = sbr.rel (0) target = $region21
    $region20: #{tpu_custom_call.1} parent=1 // pred_region
      %195 = dma.done [#allocation3], 128
    $region21: #{tpu_custom_call.1} parent=1 // pred_fallthru
      _
    %196 = vsyncpa [#allocation3], 1

</llo_original>
